<compile_context>
chip_gen: v7x
topology: tpu7x:2x2x1
jax: 0.10.0
libtpu: 0.0.40
codegen_flags: <defaults>
</compile_context>

<pallas_src>
import jax
import jax.numpy as jnp
from jax.experimental import pallas as pl
from jax.experimental.pallas import tpu as pltpu

# channels tuple from the reference module; pick pos=1 -> Cin=32, Cout=64
CHANNELS = (1, 32, 64, 128, 512, 1024, 512, 512, 256, 128, 64, 1)
POS = 1
C_IN = CHANNELS[POS]        # 32
C_OUT = CHANNELS[POS + 1]   # 64


def conv1x1_kernel(x_ref, w_ref, b_ref, o_ref):
    # x_ref: (N, Cin, HW)   w_ref: (Cout, Cin)   b_ref: (Cout, 1)   o_ref: (N, Cout, HW)
    w = w_ref[...]
    b = b_ref[...]
    n_batch = x_ref.shape[0]
    # Static unroll over the (tiny) batch dim: one MXU matmul + bias add + store per batch.
    for n in range(n_batch):
        acc = jnp.dot(w, x_ref[n], preferred_element_type=jnp.float32)  # (Cout, HW)
        o_ref[n] = (acc + b).astype(o_ref.dtype)


def conv1x1_pallas(x_nchw, weight, bias):
    """Equivalent of nn.Conv2d(Cin, Cout, kernel_size=1, stride=1, padding=0).

    x_nchw: (N, Cin, H, W) float32
    weight: (Cout, Cin, 1, 1) float32   (PyTorch layout)
    bias:   (Cout,) float32
    returns (N, Cout, H, W) float32
    """
    N, Cin, H, W = x_nchw.shape
    Cout = weight.shape[0]
    HW = H * W

    # NCHW is already (N, Cin, H*W) in memory: this reshape is free (no transpose).
    x3 = x_nchw.reshape(N, Cin, HW)
    w_mat = weight[:, :, 0, 0]          # (Cout, Cin)
    b_col = bias.reshape(Cout, 1)       # broadcasts along lanes inside the kernel

    cost = pl.CostEstimate(
        flops=2 * N * Cout * Cin * HW,
        transcendentals=0,
        bytes_accessed=4 * (N * Cin * HW + Cout * Cin + Cout + N * Cout * HW),
    )

    out3 = pl.pallas_call(
        conv1x1_kernel,
        out_shape=jax.ShapeDtypeStruct((N, Cout, HW), x_nchw.dtype),
        grid=(1,),                                           # single step: no per-step overhead
        in_specs=[
            pl.BlockSpec((N, Cin, HW), lambda i: (0, 0, 0)),  # full activations, resident
            pl.BlockSpec((Cout, Cin), lambda i: (0, 0)),      # full weight, resident
            pl.BlockSpec((Cout, 1), lambda i: (0, 0)),        # bias column, resident
        ],
        out_specs=pl.BlockSpec((N, Cout, HW), lambda i: (0, 0, 0)),
        compiler_params=pltpu.CompilerParams(
            dimension_semantics=("arbitrary",),
        ),
        cost_estimate=cost,
    )(x3, w_mat, b_col)

    return out3.reshape(N, Cout, H, W)


def reference_conv1x1(x_nchw, weight, bias):
    # Pure-JAX reference of the same 1x1 conv for correctness checking.
    w_mat = weight[:, :, 0, 0]  # (Cout, Cin)
    y = jnp.einsum("nchw,oc->nohw", x_nchw, w_mat)
    return y + bias[None, :, None, None]


if __name__ == "__main__":
    key = jax.random.PRNGKey(0)
    k_x, k_w, k_b = jax.random.split(key, 3)

    # Small shapes consistent with the module: batch=2, Cin=32, spatial=16x16
    N, H, W = 2, 16, 16
    x = jax.random.normal(k_x, (N, C_IN, H, W), dtype=jnp.float32)

    # Deterministic synthetic parameters (same shapes as nn.Conv2d(Cin, Cout, 1))
    fan_in = C_IN  # kernel_size 1x1
    bound = 1.0 / (fan_in ** 0.5)
    weight = jax.random.uniform(
        k_w, (C_OUT, C_IN, 1, 1), dtype=jnp.float32, minval=-bound, maxval=bound
    )
    bias = jax.random.uniform(
        k_b, (C_OUT,), dtype=jnp.float32, minval=-bound, maxval=bound
    )

    out = conv1x1_pallas(x, weight, bias)
    out = jax.block_until_ready(out)

    ref = reference_conv1x1(x, weight, bias)
    assert out.shape == (N, C_OUT, H, W)
    assert jnp.allclose(out, ref, atol=1e-5, rtol=1e-5), "mismatch vs reference"

    print("KERNEL_OK")
</pallas_src>

<mosaic_0001>
module attributes {stable_mosaic.version = 11 : i64} {
  func.func @conv1x1_kernel(%arg0: i32, %arg1: memref<2x32x256xf32, #tpu.memory_space<vmem>>, %arg2: memref<64x32xf32, #tpu.memory_space<vmem>>, %arg3: memref<64x1xf32, #tpu.memory_space<vmem>>, %arg4: memref<2x64x256xf32, #tpu.memory_space<vmem>>) attributes {dimension_semantics = [#tpu.dimension_semantics<arbitrary>], iteration_bounds = array<i64: 1>, scalar_prefetch = 0 : i64, scratch_operands = 0 : i64, tpu.core_type = #tpu.core_type<tc>, window_params = [{pipeline_mode = #tpu.pipeline_mode<synchronous>, transform_indices = @transform_0, window_bounds = array<i64: 2, 32, 256>}, {pipeline_mode = #tpu.pipeline_mode<synchronous>, transform_indices = @transform_1, window_bounds = array<i64: 64, 32>}, {pipeline_mode = #tpu.pipeline_mode<synchronous>, transform_indices = @transform_2, window_bounds = array<i64: 64, 1>}, {pipeline_mode = #tpu.pipeline_mode<synchronous>, transform_indices = @transform_3, window_bounds = array<i64: 2, 64, 256>}]} {
    %c0 = arith.constant 0 : index
    %c0_0 = arith.constant 0 : index
    %0 = vector.load %arg2[%c0, %c0_0] : memref<64x32xf32, #tpu.memory_space<vmem>>, vector<64x32xf32>
    %c0_1 = arith.constant 0 : index
    %c0_2 = arith.constant 0 : index
    %1 = vector.load %arg3[%c0_1, %c0_2] : memref<64x1xf32, #tpu.memory_space<vmem>>, vector<64x1xf32>
    %c0_3 = arith.constant 0 : index
    %c0_4 = arith.constant 0 : index
    %c0_5 = arith.constant 0 : index
    %2 = vector.load %arg1[%c0_3, %c0_4, %c0_5] : memref<2x32x256xf32, #tpu.memory_space<vmem>>, vector<1x32x256xf32>
    %3 = vector.shape_cast %2 : vector<1x32x256xf32> to vector<32x256xf32>
    %cst = arith.constant dense<0.000000e+00> : vector<64x256xf32>
    %4 = tpu.matmul %0, %3, %cst {dimension_numbers = #tpu.dot_dimension_numbers<[1], [0], [0], [1], [0, 0, 1, 1], [], []>} : vector<64x32xf32>, vector<32x256xf32>, vector<64x256xf32> -> vector<64x256xf32>
    %5 = vector.broadcast %1 : vector<64x1xf32> to vector<64x256xf32>
    %6 = arith.addf %4, %5 : vector<64x256xf32>
    %c0_6 = arith.constant 0 : index
    %c0_7 = arith.constant 0 : index
    %c0_8 = arith.constant 0 : index
    %7 = vector.load %arg4[%c0_6, %c0_7, %c0_8] : memref<2x64x256xf32, #tpu.memory_space<vmem>>, vector<1x64x256xf32>
    %8 = vector.shape_cast %7 : vector<1x64x256xf32> to vector<64x256xf32>
    %9 = vector.shape_cast %6 : vector<64x256xf32> to vector<1x64x256xf32>
    tpu.vector_store %arg4[%c0_6, %c0_7, %c0_8], %9 {strides = array<i32>} : memref<2x64x256xf32, #tpu.memory_space<vmem>>, vector<1x64x256xf32>,
    %c1 = arith.constant 1 : index
    %c0_9 = arith.constant 0 : index
    %c0_10 = arith.constant 0 : index
    %10 = vector.load %arg1[%c1, %c0_9, %c0_10] : memref<2x32x256xf32, #tpu.memory_space<vmem>>, vector<1x32x256xf32>
    %11 = vector.shape_cast %10 : vector<1x32x256xf32> to vector<32x256xf32>
    %cst_11 = arith.constant dense<0.000000e+00> : vector<64x256xf32>
    %12 = tpu.matmul %0, %11, %cst_11 {dimension_numbers = #tpu.dot_dimension_numbers<[1], [0], [0], [1], [0, 0, 1, 1], [], []>} : vector<64x32xf32>, vector<32x256xf32>, vector<64x256xf32> -> vector<64x256xf32>
    %13 = vector.broadcast %1 : vector<64x1xf32> to vector<64x256xf32>
    %14 = arith.addf %12, %13 : vector<64x256xf32>
    %c1_12 = arith.constant 1 : index
    %c0_13 = arith.constant 0 : index
    %c0_14 = arith.constant 0 : index
    %15 = vector.load %arg4[%c1_12, %c0_13, %c0_14] : memref<2x64x256xf32, #tpu.memory_space<vmem>>, vector<1x64x256xf32>
    %16 = vector.shape_cast %15 : vector<1x64x256xf32> to vector<64x256xf32>
    %17 = vector.shape_cast %14 : vector<64x256xf32> to vector<1x64x256xf32>
    tpu.vector_store %arg4[%c1_12, %c0_13, %c0_14], %17 {strides = array<i32>} : memref<2x64x256xf32, #tpu.memory_space<vmem>>, vector<1x64x256xf32>,
    return
  }
  func.func @transform_0(%arg0: i32) -> (i32, i32, i32) {
    %c0_i32 = arith.constant 0 : i32
    %c0_i32_0 = arith.constant 0 : i32
    %c0_i32_1 = arith.constant 0 : i32
    %c0_i32_2 = arith.constant 0 : i32
    return %c0_i32, %c0_i32_0, %c0_i32_1 : i32, i32, i32
  }
  func.func @transform_1(%arg0: i32) -> (i32, i32) {
    %c0_i32 = arith.constant 0 : i32
    %c0_i32_0 = arith.constant 0 : i32
    %c0_i32_1 = arith.constant 0 : i32
    return %c0_i32, %c0_i32_0 : i32, i32
  }
  func.func @transform_2(%arg0: i32) -> (i32, i32) {
    %c0_i32 = arith.constant 0 : i32
    %c0_i32_0 = arith.constant 0 : i32
    %c0_i32_1 = arith.constant 0 : i32
    return %c0_i32, %c0_i32_0 : i32, i32
  }
  func.func @transform_3(%arg0: i32) -> (i32, i32, i32) {
    %c0_i32 = arith.constant 0 : i32
    %c0_i32_0 = arith.constant 0 : i32
    %c0_i32_1 = arith.constant 0 : i32
    %c0_i32_2 = arith.constant 0 : i32
    return %c0_i32, %c0_i32_0, %c0_i32_1 : i32, i32, i32
  }
}

</mosaic_0001>

<llo_original>
// kernel: tpu_custom_call.1
$region0: #{tpu_custom_call.1}
  #allocation0 [shape = 'u32[]', space=smem, size = 0x4, offset = 0x4, fixed_abs, tag = 'smem constant byte address 0x4 - core index']
  #allocation1 [shape = 'u32[144,128]{1,0:T(1,128)}', space=vmem, size = 0x12000, scoped, tag = 'internal scratch']
  %s0 = inlined_call_operand.vmem [shape: f32[2,32,256], index: 0, kind: input, shape index: {}]
  %s1 = inlined_call_operand.vmem [shape: f32[64,32], index: 1, kind: input, shape index: {}]
  %s2 = inlined_call_operand.vmem [shape: f32[64,1], index: 2, kind: input, shape index: {}]
  %s3 = inlined_call_operand.hbm [shape: f32[2,64,256], index: 3, kind: output, shape index: {}]
  %s4 = sld [smem:[#allocation0]]
  $region22: #{tpu_custom_call.1} parent=0
    _
  %s6 = ssub.s32 1, %s4
  %s7 = scalar_select 0, %s6, %s4
  $region1: #{tpu_custom_call.1} parent=0
    #allocation2 [shape = 'u8[131072]{0}', space=vmem, size = 0x20000, scoped, tag = 'output window, operand 0, single buffered']
    #allocation3 [shape = 's32[1]{0}', space=sflag, size = 0x4, scoped, tag = 'scoped memory for tpu_custom_call.1']
    %8 = vsyncpa [#allocation3], 0
    // Predicated region
    $region2: #{tpu_custom_call.1} parent=1 // pred_check
      _
    $region3: #{tpu_custom_call.1} parent=1 // pred_check_branch
      %10 = sbr.rel (0) target = $region5
    $region4: #{tpu_custom_call.1} parent=1 // pred_region
      _
    $region5: #{tpu_custom_call.1} parent=1 // pred_fallthru
      _
    // Predicated region
    $region6: #{tpu_custom_call.1} parent=1 // pred_check
      _
    $region7: #{tpu_custom_call.1} parent=1 // pred_check_branch
      %12 = sbr.rel (0) target = $region9
    $region8: #{tpu_custom_call.1} parent=1 // pred_region
      _
    $region9: #{tpu_custom_call.1} parent=1 // pred_fallthru
      _
    // Predicated region
    $region10: #{tpu_custom_call.1} parent=1 // pred_check
      _
    $region11: #{tpu_custom_call.1} parent=1 // pred_check_branch
      %14 = sbr.rel (0) target = $region13
    $region12: #{tpu_custom_call.1} parent=1 // pred_region
      _
    $region13: #{tpu_custom_call.1} parent=1 // pred_fallthru
      _
    %v15 = vld [vmem:[%s1] sm:$0xff]
    %v16 = vld [vmem:[%s1 + $0x8] sm:$0xff]
    %v17 = vld [vmem:[%s1 + $0x10] sm:$0xff]
    %v18 = vld [vmem:[%s1 + $0x18] sm:$0xff]
    %v19 = vld [vmem:[%s1 + $0x20] sm:$0xff]
    %v20 = vld [vmem:[%s1 + $0x28] sm:$0xff]
    %v21 = vld [vmem:[%s1 + $0x30] sm:$0xff]
    %v22 = vld [vmem:[%s1 + $0x38] sm:$0xff]
    %v23 = vld [vmem:[%s2] sm:$0xff]
    %v24 = vld [vmem:[%s2 + $0x8] sm:$0xff]
    %v25 = vld [vmem:[%s2 + $0x10] sm:$0xff]
    %v26 = vld [vmem:[%s2 + $0x18] sm:$0xff]
    %v27 = vld [vmem:[%s2 + $0x20] sm:$0xff]
    %v28 = vld [vmem:[%s2 + $0x28] sm:$0xff]
    %v29 = vld [vmem:[%s2 + $0x30] sm:$0xff]
    %v30 = vld [vmem:[%s2 + $0x38] sm:$0xff]
    %v31 = vld [vmem:[%s0] sm:$0xff]
    %v32 = vld [vmem:[%s0 + $0x8] sm:$0xff]
    %v33 = vld [vmem:[%s0 + $0x10] sm:$0xff]
    %v34 = vld [vmem:[%s0 + $0x18] sm:$0xff]
    %v35 = vld [vmem:[%s0 + $0x20] sm:$0xff]
    %v36 = vld [vmem:[%s0 + $0x28] sm:$0xff]
    %v37 = vld [vmem:[%s0 + $0x30] sm:$0xff]
    %v38 = vld [vmem:[%s0 + $0x38] sm:$0xff]
    %40 = vset.pattern.permute.xlu0 0
    %41 = vperm.xlu0 %40, %v23
    %v42 = vpop.permute.xlu0 %41
    %45 = vset.pattern.permute.xlu0 0
    %46 = vperm.xlu0 %45, %v24
    %v47 = vpop.permute.xlu0 %46
    %50 = vset.pattern.permute.xlu0 0
    %51 = vperm.xlu0 %50, %v25
    %v52 = vpop.permute.xlu0 %51
    %55 = vset.pattern.permute.xlu0 0
    %56 = vperm.xlu0 %55, %v26
    %v57 = vpop.permute.xlu0 %56
    %60 = vset.pattern.permute.xlu0 0
    %61 = vperm.xlu0 %60, %v27
    %v62 = vpop.permute.xlu0 %61
    %65 = vset.pattern.permute.xlu0 0
    %66 = vperm.xlu0 %65, %v28
    %v67 = vpop.permute.xlu0 %66
    %70 = vset.pattern.permute.xlu0 0
    %71 = vperm.xlu0 %70, %v29
    %v72 = vpop.permute.xlu0 %71
    %75 = vset.pattern.permute.xlu0 0
    %76 = vperm.xlu0 %75, %v30
    %v77 = vpop.permute.xlu0 %76
    %vm79 = vcmask 261120
    %v81 = vsel %vm79, %v15, 0
    %v84 = vsel %vm79, %v16, 0
    %v87 = vsel %vm79, %v17, 0
    %v90 = vsel %vm79, %v18, 0
    %v93 = vsel %vm79, %v19, 0
    %v96 = vsel %vm79, %v20, 0
    %v99 = vsel %vm79, %v21, 0
    %v102 = vsel %vm79, %v22, 0
    %104 = vmatprep.subr.mxu0 %v32
    %105 = vmatpush1.msra.mxu0 %v31
    %106 = vmatprep.subr.mxu0 %v34
    %107 = vmatpush1.msra.mxu0 %v33
    %108 = vmatprep.subr.mxu0 %v36
    %109 = vmatpush1.msra.mxu0 %v35
    %110 = vmatprep.subr.mxu0 %v38
    %111 = vmatpush1.msra.mxu0 %v37
    %112 = vmatprep.subr.mxu0 0.0
    %113 = vmatpush1.msra.mxu0 0.0
    %114 = vmatprep.subr.mxu0 0.0
    %115 = vmatpush1.msra.mxu0 0.0
    %116 = vmatprep.subr.mxu0 0.0
    %117 = vmatpush1.msra.mxu0 0.0
    %118 = vmatprep.subr.mxu0 0.0
    %119 = vmatpush1.msra.mxu0 0.0
    %120 = vmatprep.subr.mxu0 0.0
    %121 = vmatpush1.msra.mxu0 0.0
    %122 = vmatprep.subr.mxu0 0.0
    %123 = vmatpush1.msra.mxu0 0.0
    %124 = vmatprep.subr.mxu0 0.0
    %125 = vmatpush1.msra.mxu0 0.0
    %126 = vmatprep.subr.mxu0 0.0
    %127 = vmatpush1.msra.mxu0 0.0
    %128 = vmatprep.subr.mxu0 0.0
    %129 = vmatpush1.msra.mxu0 0.0
    %130 = vmatprep.subr.mxu0 0.0
    %131 = vmatpush1.msra.mxu0 0.0
    %132 = vmatprep.subr.mxu0 0.0
    %133 = vmatpush1.msra.mxu0 0.0
    %134 = vmatprep.subr.mxu0 0.0
    %135 = vmatpush1.msra.mxu0 0.0
    %136 = vmatprep.subr.mxu0 0.0
    %137 = vmatpush1.msra.mxu0 0.0
    %138 = vmatprep.subr.mxu0 0.0
    %139 = vmatpush1.msra.mxu0 0.0
    %140 = vmatprep.subr.mxu0 0.0
    %141 = vmatpush1.msra.mxu0 0.0
    %142 = vmatprep.subr.mxu0 0.0
    %143 = vmatpush1.msra.mxu0 0.0
    %144 = vmatprep.subr.mxu0 0.0
    %145 = vmatpush1.msra.mxu0 0.0
    %146 = vmatprep.subr.mxu0 0.0
    %147 = vmatpush1.msra.mxu0 0.0
    %148 = vmatprep.subr.mxu0 0.0
    %149 = vmatpush1.msra.mxu0 0.0
    %150 = vmatprep.subr.mxu0 0.0
    %151 = vmatpush1.msra.mxu0 0.0
    %152 = vmatprep.subr.mxu0 0.0
    %153 = vmatpush1.msra.mxu0 0.0
    %154 = vmatprep.subr.mxu0 0.0
    %155 = vmatpush1.msra.mxu0 0.0
    %156 = vmatprep.subr.mxu0 0.0
    %157 = vmatpush1.msra.mxu0 0.0
    %158 = vmatprep.subr.mxu0 0.0
    %159 = vmatpush1.msra.mxu0 0.0
    %160 = vmatprep.subr.mxu0 0.0
    %161 = vmatpush1.msra.mxu0 0.0
    %162 = vmatprep.subr.mxu0 0.0
    %163 = vmatpush1.msra.mxu0 0.0
    %164 = vmatprep.subr.mxu0 0.0
    %165 = vmatpush1.msra.mxu0 0.0
    %166 = vmatprep.subr.mxu0 0.0
    %167 = vmatpush1.msra.mxu0 0.0
    %168 = vmatprep.mubr.f32.mxu0 0.0
    %169 = vmatmul.mubr.f32.gmra.mrb[0].mxu0 %v81
    %v170 = vpop.f32.mrb[0].mxu0
    %v171 = vadd.f32 %v42, %v170
    %v172 = vpop.f32.mrb[0].mxu0
    %v173 = vadd.f32 %v42, %v172
    %174 = vmatprep.mubr.f32.mxu0 0.0
    %175 = vmatmul.mubr.f32.gmra.mrb[0].mxu0 %v84
    %v176 = vpop.f32.mrb[0].mxu0
    %v177 = vadd.f32 %v47, %v176
    %v178 = vpop.f32.mrb[0].mxu0
    %v179 = vadd.f32 %v47, %v178
    %180 = vmatprep.mubr.f32.mxu0 0.0
    %181 = vmatmul.mubr.f32.gmra.mrb[0].mxu0 %v87
    %v182 = vpop.f32.mrb[0].mxu0
    %v183 = vadd.f32 %v52, %v182
    %v184 = vpop.f32.mrb[0].mxu0
    %v185 = vadd.f32 %v52, %v184
    %186 = vmatprep.mubr.f32.mxu0 0.0
    %187 = vmatmul.mubr.f32.gmra.mrb[0].mxu0 %v90
    %v188 = vpop.f32.mrb[0].mxu0
    %v189 = vadd.f32 %v57, %v188
    %v190 = vpop.f32.mrb[0].mxu0
    %v191 = vadd.f32 %v57, %v190
    %192 = vmatprep.mubr.f32.mxu0 0.0
    %193 = vmatmul.mubr.f32.gmra.mrb[0].mxu0 %v93
    %v194 = vpop.f32.mrb[0].mxu0
    %v195 = vadd.f32 %v62, %v194
    %v196 = vpop.f32.mrb[0].mxu0
    %v197 = vadd.f32 %v62, %v196
    %198 = vmatprep.mubr.f32.mxu0 0.0
    %199 = vmatmul.mubr.f32.gmra.mrb[0].mxu0 %v96
    %v200 = vpop.f32.mrb[0].mxu0
    %v201 = vadd.f32 %v67, %v200
    %v202 = vpop.f32.mrb[0].mxu0
    %v203 = vadd.f32 %v67, %v202
    %204 = vmatprep.mubr.f32.mxu0 0.0
    %205 = vmatmul.mubr.f32.gmra.mrb[0].mxu0 %v99
    %v206 = vpop.f32.mrb[0].mxu0
    %v207 = vadd.f32 %v72, %v206
    %v208 = vpop.f32.mrb[0].mxu0
    %v209 = vadd.f32 %v72, %v208
    %210 = vmatprep.mubr.f32.mxu0 0.0
    %211 = vmatmul.mubr.f32.gmra.mrb[0].mxu0 %v102
    %v212 = vpop.f32.mrb[0].mxu0
    %v213 = vadd.f32 %v77, %v212
    %v214 = vpop.f32.mrb[0].mxu0
    %v215 = vadd.f32 %v77, %v214
    %216 = vdwg.mxu0
    %217 = vst [vmem:[#allocation2] sm:$0xff] %v171
    %218 = vst [vmem:[#allocation2 + $0x8] sm:$0xff] %v173
    %219 = vst [vmem:[#allocation2 + $0x10] sm:$0xff] %v177
    %220 = vst [vmem:[#allocation2 + $0x18] sm:$0xff] %v179
    %221 = vst [vmem:[#allocation2 + $0x20] sm:$0xff] %v183
    %222 = vst [vmem:[#allocation2 + $0x28] sm:$0xff] %v185
    %223 = vst [vmem:[#allocation2 + $0x30] sm:$0xff] %v189
    %224 = vst [vmem:[#allocation2 + $0x38] sm:$0xff] %v191
    %225 = vst [vmem:[#allocation2 + $0x40] sm:$0xff] %v195
    %226 = vst [vmem:[#allocation2 + $0x48] sm:$0xff] %v197
    %227 = vst [vmem:[#allocation2 + $0x50] sm:$0xff] %v201
    %228 = vst [vmem:[#allocation2 + $0x58] sm:$0xff] %v203
    %229 = vst [vmem:[#allocation2 + $0x60] sm:$0xff] %v207
    %230 = vst [vmem:[#allocation2 + $0x68] sm:$0xff] %v209
    %231 = vst [vmem:[#allocation2 + $0x70] sm:$0xff] %v213
    %232 = vst [vmem:[#allocation2 + $0x78] sm:$0xff] %v215
    %s233 = scalar_lea.vmem %s0, 64
    %v234 = vld [vmem:[%s233] sm:$0xff]
    %v235 = vld [vmem:[%s233 + $0x8] sm:$0xff]
    %v236 = vld [vmem:[%s233 + $0x10] sm:$0xff]
    %v237 = vld [vmem:[%s233 + $0x18] sm:$0xff]
    %v238 = vld [vmem:[%s233 + $0x20] sm:$0xff]
    %v239 = vld [vmem:[%s233 + $0x28] sm:$0xff]
    %v240 = vld [vmem:[%s233 + $0x30] sm:$0xff]
    %v241 = vld [vmem:[%s233 + $0x38] sm:$0xff]
    %242 = vmatprep.subr.mxu0 %v235
    %243 = vmatpush1.msra.mxu0 %v234
    %244 = vmatprep.subr.mxu0 %v237
    %245 = vmatpush1.msra.mxu0 %v236
    %246 = vmatprep.subr.mxu0 %v239
    %247 = vmatpush1.msra.mxu0 %v238
    %248 = vmatprep.subr.mxu0 %v241
    %249 = vmatpush1.msra.mxu0 %v240
    %250 = vmatprep.subr.mxu0 0.0
    %251 = vmatpush1.msra.mxu0 0.0
    %252 = vmatprep.subr.mxu0 0.0
    %253 = vmatpush1.msra.mxu0 0.0
    %254 = vmatprep.subr.mxu0 0.0
    %255 = vmatpush1.msra.mxu0 0.0
    %256 = vmatprep.subr.mxu0 0.0
    %257 = vmatpush1.msra.mxu0 0.0
    %258 = vmatprep.subr.mxu0 0.0
    %259 = vmatpush1.msra.mxu0 0.0
    %260 = vmatprep.subr.mxu0 0.0
    %261 = vmatpush1.msra.mxu0 0.0
    %262 = vmatprep.subr.mxu0 0.0
    %263 = vmatpush1.msra.mxu0 0.0
    %264 = vmatprep.subr.mxu0 0.0
    %265 = vmatpush1.msra.mxu0 0.0
    %266 = vmatprep.subr.mxu0 0.0
    %267 = vmatpush1.msra.mxu0 0.0
    %268 = vmatprep.subr.mxu0 0.0
    %269 = vmatpush1.msra.mxu0 0.0
    %270 = vmatprep.subr.mxu0 0.0
    %271 = vmatpush1.msra.mxu0 0.0
    %272 = vmatprep.subr.mxu0 0.0
    %273 = vmatpush1.msra.mxu0 0.0
    %274 = vmatprep.subr.mxu0 0.0
    %275 = vmatpush1.msra.mxu0 0.0
    %276 = vmatprep.subr.mxu0 0.0
    %277 = vmatpush1.msra.mxu0 0.0
    %278 = vmatprep.subr.mxu0 0.0
    %279 = vmatpush1.msra.mxu0 0.0
    %280 = vmatprep.subr.mxu0 0.0
    %281 = vmatpush1.msra.mxu0 0.0
    %282 = vmatprep.subr.mxu0 0.0
    %283 = vmatpush1.msra.mxu0 0.0
    %284 = vmatprep.subr.mxu0 0.0
    %285 = vmatpush1.msra.mxu0 0.0
    %286 = vmatprep.subr.mxu0 0.0
    %287 = vmatpush1.msra.mxu0 0.0
    %288 = vmatprep.subr.mxu0 0.0
    %289 = vmatpush1.msra.mxu0 0.0
    %290 = vmatprep.subr.mxu0 0.0
    %291 = vmatpush1.msra.mxu0 0.0
    %292 = vmatprep.subr.mxu0 0.0
    %293 = vmatpush1.msra.mxu0 0.0
    %294 = vmatprep.subr.mxu0 0.0
    %295 = vmatpush1.msra.mxu0 0.0
    %296 = vmatprep.subr.mxu0 0.0
    %297 = vmatpush1.msra.mxu0 0.0
    %298 = vmatprep.subr.mxu0 0.0
    %299 = vmatpush1.msra.mxu0 0.0
    %300 = vmatprep.subr.mxu0 0.0
    %301 = vmatpush1.msra.mxu0 0.0
    %302 = vmatprep.subr.mxu0 0.0
    %303 = vmatpush1.msra.mxu0 0.0
    %304 = vmatprep.subr.mxu0 0.0
    %305 = vmatpush1.msra.mxu0 0.0
    %306 = vmatprep.mubr.f32.mxu0 0.0
    %307 = vmatmul.mubr.f32.gmra.mrb[0].mxu0 %v81
    %v308 = vpop.f32.mrb[0].mxu0
    %v309 = vadd.f32 %v42, %v308
    %v310 = vpop.f32.mrb[0].mxu0
    %v311 = vadd.f32 %v42, %v310
    %312 = vmatprep.mubr.f32.mxu0 0.0
    %313 = vmatmul.mubr.f32.gmra.mrb[0].mxu0 %v84
    %v314 = vpop.f32.mrb[0].mxu0
    %v315 = vadd.f32 %v47, %v314
    %v316 = vpop.f32.mrb[0].mxu0
    %v317 = vadd.f32 %v47, %v316
    %318 = vmatprep.mubr.f32.mxu0 0.0
    %319 = vmatmul.mubr.f32.gmra.mrb[0].mxu0 %v87
    %v320 = vpop.f32.mrb[0].mxu0
    %v321 = vadd.f32 %v52, %v320
    %v322 = vpop.f32.mrb[0].mxu0
    %v323 = vadd.f32 %v52, %v322
    %324 = vmatprep.mubr.f32.mxu0 0.0
    %325 = vmatmul.mubr.f32.gmra.mrb[0].mxu0 %v90
    %v326 = vpop.f32.mrb[0].mxu0
    %v327 = vadd.f32 %v57, %v326
    %v328 = vpop.f32.mrb[0].mxu0
    %v329 = vadd.f32 %v57, %v328
    %330 = vmatprep.mubr.f32.mxu0 0.0
    %331 = vmatmul.mubr.f32.gmra.mrb[0].mxu0 %v93
    %v332 = vpop.f32.mrb[0].mxu0
    %v333 = vadd.f32 %v62, %v332
    %v334 = vpop.f32.mrb[0].mxu0
    %v335 = vadd.f32 %v62, %v334
    %336 = vmatprep.mubr.f32.mxu0 0.0
    %337 = vmatmul.mubr.f32.gmra.mrb[0].mxu0 %v96
    %v338 = vpop.f32.mrb[0].mxu0
    %v339 = vadd.f32 %v67, %v338
    %v340 = vpop.f32.mrb[0].mxu0
    %v341 = vadd.f32 %v67, %v340
    %342 = vmatprep.mubr.f32.mxu0 0.0
    %343 = vmatmul.mubr.f32.gmra.mrb[0].mxu0 %v99
    %v344 = vpop.f32.mrb[0].mxu0
    %v345 = vadd.f32 %v72, %v344
    %v346 = vpop.f32.mrb[0].mxu0
    %v347 = vadd.f32 %v72, %v346
    %348 = vmatprep.mubr.f32.mxu0 0.0
    %349 = vmatmul.mubr.f32.gmra.mrb[0].mxu0 %v102
    %v350 = vpop.f32.mrb[0].mxu0
    %v351 = vadd.f32 %v77, %v350
    %v352 = vpop.f32.mrb[0].mxu0
    %v353 = vadd.f32 %v77, %v352
    %354 = vdwg.mxu0
    %s355 = scalar_lea.vmem [#allocation2], 128
    %356 = vst [vmem:[%s355] sm:$0xff] %v309
    %357 = vst [vmem:[%s355 + $0x8] sm:$0xff] %v311
    %358 = vst [vmem:[%s355 + $0x10] sm:$0xff] %v315
    %359 = vst [vmem:[%s355 + $0x18] sm:$0xff] %v317
    %360 = vst [vmem:[%s355 + $0x20] sm:$0xff] %v321
    %361 = vst [vmem:[%s355 + $0x28] sm:$0xff] %v323
    %362 = vst [vmem:[%s355 + $0x30] sm:$0xff] %v327
    %363 = vst [vmem:[%s355 + $0x38] sm:$0xff] %v329
    %364 = vst [vmem:[%s355 + $0x40] sm:$0xff] %v333
    %365 = vst [vmem:[%s355 + $0x48] sm:$0xff] %v335
    %366 = vst [vmem:[%s355 + $0x50] sm:$0xff] %v339
    %367 = vst [vmem:[%s355 + $0x58] sm:$0xff] %v341
    %368 = vst [vmem:[%s355 + $0x60] sm:$0xff] %v345
    %369 = vst [vmem:[%s355 + $0x68] sm:$0xff] %v347
    %370 = vst [vmem:[%s355 + $0x70] sm:$0xff] %v351
    %371 = vst [vmem:[%s355 + $0x78] sm:$0xff] %v353
    // Predicated region
    $region14: #{tpu_custom_call.1} parent=1 // pred_check
      _
    $region15: #{tpu_custom_call.1} parent=1 // pred_check_branch
      %373 = sbr.rel (0) target = $region17
    $region16: #{tpu_custom_call.1} parent=1 // pred_region
      %s375 = ssub.s32 4096, 4096
      %376 = vsyncadd [#allocation3], %s375
      %s377 = sshll.u32 [#allocation2], 4
      %s378 = int_to_ptr.vmem [resolvable:$true] %s377
      %383 = dma.vmem_to_hbm [thread:$0]  %s378, 4096, %s3, [#allocation3], 256, 256, 16
    $region17: #{tpu_custom_call.1} parent=1 // pred_fallthru
      _
    // Predicated region
    $region18: #{tpu_custom_call.1} parent=1 // pred_check
      _
    $region19: #{tpu_custom_call.1} parent=1 // pred_check_branch
      %385 = sbr.rel (0) target = $region21
    $region20: #{tpu_custom_call.1} parent=1 // pred_region
      %386 = dma.done [#allocation3], 4096
    $region21: #{tpu_custom_call.1} parent=1 // pred_fallthru
      _
    %387 = vsyncpa [#allocation3], 1

</llo_original>
